<compile_context>
chip_gen: v5e
topology: v5e:2x2
jax: 0.10.0
libtpu: 0.0.40
codegen_flags: <defaults>
</compile_context>

<pallas_src>
import jax
import jax.numpy as jnp
from jax.experimental import pallas as pl
from jax.experimental.pallas import tpu as pltpu

_LANES = 128


# --------------------------------------------------------------------------- #
# Hardware-dependent knobs (defensive: fall back to safe defaults).
# --------------------------------------------------------------------------- #
def _vmem_capacity_bytes():
    try:
        return int(pltpu.get_tpu_info().vmem_capacity_bytes)
    except Exception:
        return 64 * 1024 * 1024


def _target_block_bytes():
    # v7x (64 MiB VMEM/TC): ~4 MiB in+out per block (double-buffered ~16 MiB).
    # v5e/v6e (128 MiB VMEM): ~8 MiB blocks.
    cap = _vmem_capacity_bytes()
    return (4 << 20) if cap <= (64 << 20) else (8 << 20)


def _use_mxu(c_in, c_out):
    # VPU cost per (8,128) f32 pixel tile ~ c_in*c_out/2 VALU cycles (no f32 FMA,
    # 4 slots) vs HBM cost ~ k*(c_in+c_out) cycles (k smaller on faster HBM).
    # v7x saturates the VALU earliest -> lower threshold; v6e/v5e later.
    cap = _vmem_capacity_bytes()
    thresh = 2.5 if cap <= (64 << 20) else 6.0
    return c_in * c_out > thresh * (c_in + c_out)


# --------------------------------------------------------------------------- #
# VPU path: pixel-dense (N, C_in, G, 128) layout, scalar weights in SMEM.
# --------------------------------------------------------------------------- #
def _make_vpu_kernel(c_in, c_out, cs, tb):
    def kernel(x_ref, w_ref, b_ref, o_ref):
        # x_ref: (tb, c_in, tg, 128) VMEM   w_ref: (c_out*c_in,) f32 SMEM
        # b_ref: (c_out,) f32 SMEM          o_ref: (tb, c_out, tg, 128) VMEM
        tg = x_ref.shape[2]
        n_chunks = tg // cs

        @pl.loop(0, tb)
        def _(b):
            @pl.loop(0, n_chunks)
            def _(c):
                r0 = pl.multiple_of(c * cs, cs)
                accs = [None] * c_out
                # ci-outer / co-inner: each input chunk loaded & upcast once,
                # c_out register-resident accumulators.
                for ci in range(c_in):
                    xc = x_ref[b, ci, pl.ds(r0, cs), :].astype(jnp.float32)
                    for co in range(c_out):
                        w = w_ref[co * c_in + ci]
                        accs[co] = xc * w if ci == 0 else accs[co] + xc * w
                for co in range(c_out):
                    o_ref[b, co, pl.ds(r0, cs), :] = (
                        accs[co] + b_ref[co]
                    ).astype(o_ref.dtype)

    return kernel


def _outconv_vpu(x, w_mat, b_vec, target):
    N, C_in, H, W = x.shape
    C_out = w_mat.shape[0]
    HW = H * W
    out_dtype = x.dtype
    itemsize = jnp.dtype(x.dtype).itemsize
    rows_per_vreg = 8 * max(1, 4 // itemsize)      # 8 f32 / 16 bf16 / 32 int8

    G = -(-HW // _LANES)                            # ceil(HW / 128)
    x_flat = x.reshape(N, C_in, HW)
    if G * _LANES != HW:
        # TODO(synk): ragged HW%128 tails still cost one extra pad pass of x and a
        # slice pass of y; fold the tail into an in-kernel masked store instead.
        x_flat = jnp.pad(x_flat, ((0, 0), (0, 0), (0, G * _LANES - HW)))
    x_tiles = x_flat.reshape(N, C_in, G, _LANES)

    # Chunk rows: live set = (C_out accumulators + 1 input chunk + headroom) vregs.
    cs = (384 // (C_out + 2)) // rows_per_vreg * rows_per_vreg
    cs = int(min(32, max(rows_per_vreg, cs)))
    if G <= cs:
        cs = tg = int(G)
        n_steps = 1
    else:
        bytes_per_row = _LANES * (C_in + C_out) * itemsize
        tg = max(cs, (target // bytes_per_row) // cs * cs)
        tg = int(min(tg, max(cs, G // cs * cs)))
        n_steps = -(-G // tg)

    # Batch blocking when a whole image fits in one block (small images).
    tb = 1
    if tg >= G and N > 1:
        per_img = G * _LANES * (C_in + C_out) * itemsize
        tb = int(max(1, min(N, target // max(per_img, 1))))
        while N % tb:
            tb -= 1

    w_flat = w_mat.reshape(C_out * C_in)            # 1-D SMEM: no (8,128) padding
    kernel = _make_vpu_kernel(C_in, C_out, cs, tb)

    bi = tb * C_in * tg * _LANES * itemsize
    bo = tb * C_out * tg * _LANES * itemsize
    vmem_limit = int(min(max(2 * (bi + bo) + (8 << 20), 16 << 20), 112 << 20))

    out_tiles = pl.pallas_call(
        kernel,
        out_shape=jax.ShapeDtypeStruct((N, C_out, G, _LANES), out_dtype),
        grid=(N // tb, n_steps),
        in_specs=[
            pl.BlockSpec((tb, C_in, tg, _LANES), lambda n, g: (n, 0, g, 0)),
            pl.BlockSpec(memory_space=pltpu.MemorySpace.SMEM),   # weights (flat)
            pl.BlockSpec(memory_space=pltpu.MemorySpace.SMEM),   # bias
        ],
        out_specs=pl.BlockSpec((tb, C_out, tg, _LANES), lambda n, g: (n, 0, g, 0)),
        compiler_params=pltpu.CompilerParams(
            dimension_semantics=("parallel", "parallel"),
            vmem_limit_bytes=vmem_limit,
        ),
        cost_estimate=pl.CostEstimate(
            flops=2 * N * HW * C_in * C_out,
            transcendentals=0,
            bytes_accessed=int(itemsize * N * HW * (C_in + C_out)
                               + 4 * (C_out * C_in + C_out)),
        ),
    )(x_tiles, w_flat, b_vec)

    out_flat = out_tiles.reshape(N, C_out, G * _LANES)
    if G * _LANES != HW:
        out_flat = out_flat[:, :, :HW]
    return out_flat.reshape(N, C_out, H, W)


# --------------------------------------------------------------------------- #
# MXU path: flat (N, C_in, HW) layout, weights in VMEM, dot contracting C_in.
# No host-side pad/slice: ragged HW tail blocks are masked by Pallas.
# --------------------------------------------------------------------------- #
def _make_mxu_kernel(pch):
    def kernel(x_ref, w_ref, b_ref, o_ref):
        # x_ref: (1, C_in, TP) VMEM   w_ref: (C_out, C_in) f32 VMEM
        # b_ref: (C_out, 1) f32 VMEM  o_ref: (1, C_out, TP) VMEM
        tp = x_ref.shape[-1]
        w = w_ref[...]
        b = b_ref[...]

        @pl.loop(0, tp // pch)
        def _(c):
            l0 = pl.multiple_of(c * pch, pch)
            xc = x_ref[0, :, pl.ds(l0, pch)].astype(jnp.float32)       # (C_in, pch)
            yc = jnp.dot(w, xc, preferred_element_type=jnp.float32) + b
            o_ref[0, :, pl.ds(l0, pch)] = yc.astype(o_ref.dtype)

    return kernel


def _outconv_mxu(x, w_mat, b_vec, target):
    N, C_in, H, W = x.shape
    C_out = w_mat.shape[0]
    HW = H * W
    itemsize = jnp.dtype(x.dtype).itemsize
    x_flat = x.reshape(N, C_in, HW)                 # free reshape, never padded

    # Lane chunk kept vreg-resident: x chunk (C_in,pch) f32 + (C_out,pch) result.
    grp = 2 * (-(-C_in // 8)) + 2 * (-(-C_out // 8))
    pch = int(min(max((40 // max(grp, 1)) * 128, 128), 1024))
    if HW <= pch:
        tp = pch = int(HW)
    else:
        bytes_per_px = (C_in + C_out) * itemsize
        tp = max(pch, (target // bytes_per_px) // pch * pch)
        tp = int(min(tp, max(pch, HW // pch * pch)))
    n_steps = -(-HW // tp)

    w_vmem = w_mat.astype(jnp.float32)                      # (C_out, C_in)
    b_vmem = b_vec.astype(jnp.float32).reshape(C_out, 1)    # lane-broadcastable

    bi = C_in * tp * itemsize
    bo = C_out * tp * itemsize
    vmem_limit = int(min(max(2 * (bi + bo) + (8 << 20), 16 << 20), 112 << 20))

    out_flat = pl.pallas_call(
        _make_mxu_kernel(pch),
        out_shape=jax.ShapeDtypeStruct((N, C_out, HW), x.dtype),
        grid=(N, n_steps),
        in_specs=[
            pl.BlockSpec((1, C_in, tp), lambda n, p: (n, 0, p)),
            pl.BlockSpec((C_out, C_in), lambda n, p: (0, 0)),    # weights in VMEM
            pl.BlockSpec((C_out, 1), lambda n, p: (0, 0)),       # bias in VMEM
        ],
        out_specs=pl.BlockSpec((1, C_out, tp), lambda n, p: (n, 0, p)),
        compiler_params=pltpu.CompilerParams(
            dimension_semantics=("parallel", "parallel"),
            vmem_limit_bytes=vmem_limit,
        ),
        cost_estimate=pl.CostEstimate(
            flops=2 * N * HW * C_in * C_out,
            transcendentals=0,
            bytes_accessed=int(itemsize * N * HW * (C_in + C_out)
                               + 4 * (C_out * C_in + C_out)),
        ),
    )(x_flat, w_vmem, b_vmem)
    return out_flat.reshape(N, C_out, H, W)


# --------------------------------------------------------------------------- #
# Public entry point.
# --------------------------------------------------------------------------- #
def outconv_pallas(x_nchw, weight, bias):
    """1x1 conv. x: (N, C_in, H, W); weight: (C_out, C_in, 1, 1); bias: (C_out,)."""
    N, C_in, H, W = x_nchw.shape
    C_out = weight.shape[0]
    w_mat = weight.reshape(C_out, C_in).astype(jnp.float32)
    b_vec = bias.reshape(C_out).astype(jnp.float32)
    target = _target_block_bytes()
    if _use_mxu(C_in, C_out):
        return _outconv_mxu(x_nchw, w_mat, b_vec, target)
    return _outconv_vpu(x_nchw, w_mat, b_vec, target)


if __name__ == "__main__":
    key = jax.random.PRNGKey(0)
    k_x, k_w, k_b = jax.random.split(key, 3)

    N, C_in, C_out, Hs, Ws = 2, 4, 3, 16, 16

    x = jax.random.normal(k_x, (N, C_in, Hs, Ws), dtype=jnp.float32)
    fan_in = C_in * 1 * 1
    bound = 1.0 / (fan_in ** 0.5)
    weight = jax.random.uniform(
        k_w, (C_out, C_in, 1, 1), minval=-bound, maxval=bound, dtype=jnp.float32
    )
    bias = jax.random.uniform(
        k_b, (C_out,), minval=-bound, maxval=bound, dtype=jnp.float32
    )

    y = outconv_pallas(x, weight, bias)
    y = jax.block_until_ready(y)

    # Pure-JAX reference (1x1 conv == per-pixel channel matmul + bias)
    y_ref = (
        jnp.einsum("nchw,oc->nohw", x, weight.reshape(C_out, C_in))
        + bias[None, :, None, None]
    )
    assert y.shape == (N, C_out, Hs, Ws)
    assert jnp.allclose(y, y_ref, atol=1e-5, rtol=1e-5)

    print("KERNEL_OK")
</pallas_src>

<mosaic_0001>
module attributes {stable_mosaic.version = 11 : i64} {
  func.func @kernel(%arg0: i32, %arg1: i32, %arg2: memref<2x4x2x128xf32, #tpu.memory_space<vmem>>, %arg3: memref<12xf32, #tpu.memory_space<smem>>, %arg4: memref<3xf32, #tpu.memory_space<smem>>, %arg5: memref<2x3x2x128xf32, #tpu.memory_space<vmem>>) attributes {dimension_semantics = [#tpu.dimension_semantics<parallel>, #tpu.dimension_semantics<parallel>], iteration_bounds = array<i64: 1, 1>, scalar_prefetch = 0 : i64, scratch_operands = 0 : i64, tpu.core_type = #tpu.core_type<tc>, window_params = [{transform_indices = @transform_0, window_bounds = array<i64: 2, 4, 2, 128>}, {transform_indices = @transform_1, window_bounds = array<i64: 12>}, {transform_indices = @transform_2, window_bounds = array<i64: 3>}, {transform_indices = @transform_3, window_bounds = array<i64: 2, 3, 2, 128>}]} {
    %c0_i32 = arith.constant 0 : i32
    %c2_i32 = arith.constant 2 : i32
    %0 = arith.addi %c0_i32, %c2_i32 : i32
    %c1_i32 = arith.constant 1 : i32
    scf.for %arg6 = %c0_i32 to %0 step %c1_i32  : i32 {
      %c1_i32_1 = arith.constant 1 : i32
      %1 = arith.muli %arg6, %c1_i32_1 : i32
      %c0_i32_2 = arith.constant 0 : i32
      %2 = arith.addi %c0_i32_2, %1 : i32
      %c0_i32_3 = arith.constant 0 : i32
      %c1_i32_4 = arith.constant 1 : i32
      %3 = arith.muli %c0_i32_3, %c1_i32_4 : i32
      %c0_i32_5 = arith.constant 0 : i32
      %4 = arith.addi %c0_i32_5, %3 : i32
      %c2_i32_6 = arith.constant 2 : i32
      %5 = arith.muli %4, %c2_i32_6 : i32
      %6 = tpu.assume_multiple %5, 2 : i32
      %7 = arith.index_cast %2 : i32 to index
      %c0 = arith.constant 0 : index
      %8 = arith.index_cast %6 : i32 to index
      %c0_7 = arith.constant 0 : index
      %9 = vector.load %arg2[%7, %c0, %8, %c0_7] : memref<2x4x2x128xf32, #tpu.memory_space<vmem>>, vector<1x1x2x128xf32>
      %10 = vector.shape_cast %9 : vector<1x1x2x128xf32> to vector<2x128xf32>
      %c0_8 = arith.constant 0 : index
      %11 = memref.load %arg3[%c0_8] : memref<12xf32, #tpu.memory_space<smem>>
      %12 = vector.broadcast %11 : f32 to vector<2x128xf32>
      %13 = arith.mulf %10, %12 : vector<2x128xf32>
      %c4 = arith.constant 4 : index
      %14 = memref.load %arg3[%c4] : memref<12xf32, #tpu.memory_space<smem>>
      %15 = vector.broadcast %14 : f32 to vector<2x128xf32>
      %16 = arith.mulf %10, %15 : vector<2x128xf32>
      %c8 = arith.constant 8 : index
      %17 = memref.load %arg3[%c8] : memref<12xf32, #tpu.memory_space<smem>>
      %18 = vector.broadcast %17 : f32 to vector<2x128xf32>
      %19 = arith.mulf %10, %18 : vector<2x128xf32>
      %20 = arith.index_cast %2 : i32 to index
      %c1 = arith.constant 1 : index
      %21 = arith.index_cast %6 : i32 to index
      %c0_9 = arith.constant 0 : index
      %22 = vector.load %arg2[%20, %c1, %21, %c0_9] : memref<2x4x2x128xf32, #tpu.memory_space<vmem>>, vector<1x1x2x128xf32>
      %23 = vector.shape_cast %22 : vector<1x1x2x128xf32> to vector<2x128xf32>
      %c1_10 = arith.constant 1 : index
      %24 = memref.load %arg3[%c1_10] : memref<12xf32, #tpu.memory_space<smem>>
      %25 = vector.broadcast %24 : f32 to vector<2x128xf32>
      %26 = arith.mulf %23, %25 : vector<2x128xf32>
      %27 = arith.addf %13, %26 : vector<2x128xf32>
      %c5 = arith.constant 5 : index
      %28 = memref.load %arg3[%c5] : memref<12xf32, #tpu.memory_space<smem>>
      %29 = vector.broadcast %28 : f32 to vector<2x128xf32>
      %30 = arith.mulf %23, %29 : vector<2x128xf32>
      %31 = arith.addf %16, %30 : vector<2x128xf32>
      %c9 = arith.constant 9 : index
      %32 = memref.load %arg3[%c9] : memref<12xf32, #tpu.memory_space<smem>>
      %33 = vector.broadcast %32 : f32 to vector<2x128xf32>
      %34 = arith.mulf %23, %33 : vector<2x128xf32>
      %35 = arith.addf %19, %34 : vector<2x128xf32>
      %36 = arith.index_cast %2 : i32 to index
      %c2 = arith.constant 2 : index
      %37 = arith.index_cast %6 : i32 to index
      %c0_11 = arith.constant 0 : index
      %38 = vector.load %arg2[%36, %c2, %37, %c0_11] : memref<2x4x2x128xf32, #tpu.memory_space<vmem>>, vector<1x1x2x128xf32>
      %39 = vector.shape_cast %38 : vector<1x1x2x128xf32> to vector<2x128xf32>
      %c2_12 = arith.constant 2 : index
      %40 = memref.load %arg3[%c2_12] : memref<12xf32, #tpu.memory_space<smem>>
      %41 = vector.broadcast %40 : f32 to vector<2x128xf32>
      %42 = arith.mulf %39, %41 : vector<2x128xf32>
      %43 = arith.addf %27, %42 : vector<2x128xf32>
      %c6 = arith.constant 6 : index
      %44 = memref.load %arg3[%c6] : memref<12xf32, #tpu.memory_space<smem>>
      %45 = vector.broadcast %44 : f32 to vector<2x128xf32>
      %46 = arith.mulf %39, %45 : vector<2x128xf32>
      %47 = arith.addf %31, %46 : vector<2x128xf32>
      %c10 = arith.constant 10 : index
      %48 = memref.load %arg3[%c10] : memref<12xf32, #tpu.memory_space<smem>>
      %49 = vector.broadcast %48 : f32 to vector<2x128xf32>
      %50 = arith.mulf %39, %49 : vector<2x128xf32>
      %51 = arith.addf %35, %50 : vector<2x128xf32>
      %52 = arith.index_cast %2 : i32 to index
      %c3 = arith.constant 3 : index
      %53 = arith.index_cast %6 : i32 to index
      %c0_13 = arith.constant 0 : index
      %54 = vector.load %arg2[%52, %c3, %53, %c0_13] : memref<2x4x2x128xf32, #tpu.memory_space<vmem>>, vector<1x1x2x128xf32>
      %55 = vector.shape_cast %54 : vector<1x1x2x128xf32> to vector<2x128xf32>
      %c3_14 = arith.constant 3 : index
      %56 = memref.load %arg3[%c3_14] : memref<12xf32, #tpu.memory_space<smem>>
      %57 = vector.broadcast %56 : f32 to vector<2x128xf32>
      %58 = arith.mulf %55, %57 : vector<2x128xf32>
      %59 = arith.addf %43, %58 : vector<2x128xf32>
      %c7 = arith.constant 7 : index
      %60 = memref.load %arg3[%c7] : memref<12xf32, #tpu.memory_space<smem>>
      %61 = vector.broadcast %60 : f32 to vector<2x128xf32>
      %62 = arith.mulf %55, %61 : vector<2x128xf32>
      %63 = arith.addf %47, %62 : vector<2x128xf32>
      %c11 = arith.constant 11 : index
      %64 = memref.load %arg3[%c11] : memref<12xf32, #tpu.memory_space<smem>>
      %65 = vector.broadcast %64 : f32 to vector<2x128xf32>
      %66 = arith.mulf %55, %65 : vector<2x128xf32>
      %67 = arith.addf %51, %66 : vector<2x128xf32>
      %c0_15 = arith.constant 0 : index
      %68 = memref.load %arg4[%c0_15] : memref<3xf32, #tpu.memory_space<smem>>
      %69 = vector.broadcast %68 : f32 to vector<2x128xf32>
      %70 = arith.addf %59, %69 : vector<2x128xf32>
      %71 = arith.index_cast %2 : i32 to index
      %c0_16 = arith.constant 0 : index
      %72 = arith.index_cast %6 : i32 to index
      %c0_17 = arith.constant 0 : index
      %73 = vector.load %arg5[%71, %c0_16, %72, %c0_17] : memref<2x3x2x128xf32, #tpu.memory_space<vmem>>, vector<1x1x2x128xf32>
      %74 = vector.shape_cast %73 : vector<1x1x2x128xf32> to vector<2x128xf32>
      %75 = vector.shape_cast %70 : vector<2x128xf32> to vector<1x1x2x128xf32>
      tpu.vector_store %arg5[%71, %c0_16, %72, %c0_17], %75 {strides = array<i32>} : memref<2x3x2x128xf32, #tpu.memory_space<vmem>>, vector<1x1x2x128xf32>,
      %c1_18 = arith.constant 1 : index
      %76 = memref.load %arg4[%c1_18] : memref<3xf32, #tpu.memory_space<smem>>
      %77 = vector.broadcast %76 : f32 to vector<2x128xf32>
      %78 = arith.addf %63, %77 : vector<2x128xf32>
      %79 = arith.index_cast %2 : i32 to index
      %c1_19 = arith.constant 1 : index
      %80 = arith.index_cast %6 : i32 to index
      %c0_20 = arith.constant 0 : index
      %81 = vector.load %arg5[%79, %c1_19, %80, %c0_20] : memref<2x3x2x128xf32, #tpu.memory_space<vmem>>, vector<1x1x2x128xf32>
      %82 = vector.shape_cast %81 : vector<1x1x2x128xf32> to vector<2x128xf32>
      %83 = vector.shape_cast %78 : vector<2x128xf32> to vector<1x1x2x128xf32>
      tpu.vector_store %arg5[%79, %c1_19, %80, %c0_20], %83 {strides = array<i32>} : memref<2x3x2x128xf32, #tpu.memory_space<vmem>>, vector<1x1x2x128xf32>,
      %c2_21 = arith.constant 2 : index
      %84 = memref.load %arg4[%c2_21] : memref<3xf32, #tpu.memory_space<smem>>
      %85 = vector.broadcast %84 : f32 to vector<2x128xf32>
      %86 = arith.addf %67, %85 : vector<2x128xf32>
      %87 = arith.index_cast %2 : i32 to index
      %c2_22 = arith.constant 2 : index
      %88 = arith.index_cast %6 : i32 to index
      %c0_23 = arith.constant 0 : index
      %89 = vector.load %arg5[%87, %c2_22, %88, %c0_23] : memref<2x3x2x128xf32, #tpu.memory_space<vmem>>, vector<1x1x2x128xf32>
      %90 = vector.shape_cast %89 : vector<1x1x2x128xf32> to vector<2x128xf32>
      %91 = vector.shape_cast %86 : vector<2x128xf32> to vector<1x1x2x128xf32>
      tpu.vector_store %arg5[%87, %c2_22, %88, %c0_23], %91 {strides = array<i32>} : memref<2x3x2x128xf32, #tpu.memory_space<vmem>>, vector<1x1x2x128xf32>,
      %c1_i32_24 = arith.constant 1 : i32
    }
    %c2_i32_0 = arith.constant 2 : i32
    return
  }
  func.func @transform_0(%arg0: i32, %arg1: i32) -> (i32, i32, i32, i32) {
    %c0_i32 = arith.constant 0 : i32
    %c0_i32_0 = arith.constant 0 : i32
    %c0_i32_1 = arith.constant 0 : i32
    return %arg0, %c0_i32, %arg1, %c0_i32_0 : i32, i32, i32, i32
  }
  func.func @transform_1(%arg0: i32, %arg1: i32) -> i32 {
    %c0_i32 = arith.constant 0 : i32
    %c0_i32_0 = arith.constant 0 : i32
    return %c0_i32 : i32
  }
  func.func @transform_2(%arg0: i32, %arg1: i32) -> i32 {
    %c0_i32 = arith.constant 0 : i32
    %c0_i32_0 = arith.constant 0 : i32
    return %c0_i32 : i32
  }
  func.func @transform_3(%arg0: i32, %arg1: i32) -> (i32, i32, i32, i32) {
    %c0_i32 = arith.constant 0 : i32
    %c0_i32_0 = arith.constant 0 : i32
    %c0_i32_1 = arith.constant 0 : i32
    return %arg0, %c0_i32, %arg1, %c0_i32_0 : i32, i32, i32, i32
  }
}

</mosaic_0001>

<llo_original>
// kernel: tpu_custom_call.1
$region0: #{tpu_custom_call.1}
  #allocation0 [shape = 'u32[]', space=smem, size = 0x4, offset = 0x4, fixed_abs, tag = 'smem constant byte address 0x4 - core index']
  #allocation1 [shape = 'u32[72,128]{1,0:T(1,128)}', space=vmem, size = 0x9000, scoped, tag = 'internal scratch']
  %s0 = inlined_call_operand.hbm [shape: f32[2,4,2,128], index: 0, kind: input, shape index: {}]
  %s1 = inlined_call_operand.hbm [shape: f32[12], index: 1, kind: input, shape index: {}]
  %s2 = inlined_call_operand.vmem [shape: f32[3], index: 2, kind: input, shape index: {}]
  %s3 = inlined_call_operand.hbm [shape: f32[2,3,2,128], index: 3, kind: output, shape index: {}]
  %s4 = sld [smem:[#allocation0]]
  $region41: #{tpu_custom_call.1} parent=0
    _
  %s6 = ssub.s32 1, %s4
  %s7 = scalar_select 0, %s6, %s4
  $region1: #{tpu_custom_call.1} parent=0
    #allocation2 [shape = 'u8[8192]{0}', space=vmem, size = 0x2000, scoped, tag = 'input window, operand 0, single buffered']
    #allocation3 [shape = 's32[1]{0}', space=sflag, size = 0x4, scoped, tag = 'scoped memory for tpu_custom_call.1']
    #allocation4 [shape = 's32[1]{0}', space=sflag, size = 0x4, scoped, tag = 'scoped memory for tpu_custom_call.1']
    #allocation5 [shape = 's32[1]{0}', space=sflag, size = 0x4, scoped, tag = 'scoped memory for tpu_custom_call.1']
    #allocation6 [shape = 's32[1]{0}', space=sflag, size = 0x4, scoped, tag = 'scoped memory for tpu_custom_call.1']
    #allocation7 [shape = 'u8[512]{0}', space=smem, size = 0x200, scoped, tag = 'input window, operand 1, single buffered']
    #allocation8 [shape = 'u8[512]{0}', space=smem, size = 0x200, scoped, tag = 'input window, operand 2, single buffered']
    #allocation9 [shape = 'u8[6144]{0}', space=vmem, size = 0x1800, scoped, tag = 'output window, operand 0, single buffered']
    %8 = vsyncpa [#allocation3], 0
    %9 = vsyncpa [#allocation5], 0
    %10 = vsyncpa [#allocation6], 0
    %11 = vsyncpa [#allocation4], 0
    // Predicated region
    $region2: #{tpu_custom_call.1} parent=1 // pred_check
      _
    $region3: #{tpu_custom_call.1} parent=1 // pred_check_branch
      %13 = sbr.rel (0) target = $region5
    $region4: #{tpu_custom_call.1} parent=1 // pred_region
      %15 = vsyncadd [#allocation3], 0
      %s16 = sshll.u32 %s0, 4
      %s17 = int_to_ptr.hbm [resolvable:$true] %s16
      %s18 = sshll.u32 [#allocation2], 4
      %s19 = int_to_ptr.vmem [resolvable:$true] %s18
      %24 = dma.hbm_to_vmem [thread:$0]  %s17, 256, %s19, [#allocation3], 32, 32, 2
    $region5: #{tpu_custom_call.1} parent=1 // pred_fallthru
      _
    // Predicated region
    $region6: #{tpu_custom_call.1} parent=1 // pred_check
      _
    $region7: #{tpu_custom_call.1} parent=1 // pred_check_branch
      %26 = sbr.rel (0) target = $region9
    $region8: #{tpu_custom_call.1} parent=1 // pred_region
      %28 = vsyncadd [#allocation5], 0
      %s30 = sshll.u32 %s1, 4
      %s31 = int_to_ptr.hbm [resolvable:$true] %s30
      %33 = dma.hbm_to_smem %s31, 16, [#allocation7], [#allocation5]
    $region9: #{tpu_custom_call.1} parent=1 // pred_fallthru
      _
    // Predicated region
    $region10: #{tpu_custom_call.1} parent=1 // pred_check
      _
    $region11: #{tpu_custom_call.1} parent=1 // pred_check_branch
      %35 = sbr.rel (0) target = $region13
    $region12: #{tpu_custom_call.1} parent=1 // pred_region
      %37 = vsyncadd [#allocation6], 0
      %s39 = sshll.u32 %s2, 4
      %s40 = int_to_ptr.vmem [resolvable:$true] %s39
      %42 = dma.vmem_to_smem %s40, 16, [#allocation8], [#allocation6]
    $region13: #{tpu_custom_call.1} parent=1 // pred_fallthru
      _
    // Predicated region
    $region14: #{tpu_custom_call.1} parent=1 // pred_check
      _
    $region15: #{tpu_custom_call.1} parent=1 // pred_check_branch
      %44 = sbr.rel (0) target = $region17
    $region16: #{tpu_custom_call.1} parent=1 // pred_region
      %46 = dma.done [#allocation3], 256
    $region17: #{tpu_custom_call.1} parent=1 // pred_fallthru
      _
    // Predicated region
    $region18: #{tpu_custom_call.1} parent=1 // pred_check
      _
    $region19: #{tpu_custom_call.1} parent=1 // pred_check_branch
      %48 = sbr.rel (0) target = $region21
    $region20: #{tpu_custom_call.1} parent=1 // pred_region
      %50 = dma.done [#allocation5], 16
    $region21: #{tpu_custom_call.1} parent=1 // pred_fallthru
      _
    // Predicated region
    $region22: #{tpu_custom_call.1} parent=1 // pred_check
      _
    $region23: #{tpu_custom_call.1} parent=1 // pred_check_branch
      %52 = sbr.rel (0) target = $region25
    $region24: #{tpu_custom_call.1} parent=1 // pred_region
      %54 = dma.done [#allocation6], 16
    $region25: #{tpu_custom_call.1} parent=1 // pred_fallthru
      _
    %55 = sfence
    loop: start=0, step=1, limit=2
    $region26: #{tpu_custom_call.1} parent=1 // loop_pre_header
      _
    $region27: #{tpu_custom_call.1} parent=1 // loop_header
      %s57 = sphi 0, %s61
      %p58 = scmp.ge.s32.totalorder %s57, 2
    $region28: #{tpu_custom_call.1} parent=1 // loop_header_branch
      %60 = sbr.rel (%p58) target = $region32
    $region29: #{tpu_custom_call.1} parent=1 // loop_body
      %s62 = smul.u32 %s57, 8
      %s63 = sadd.s32 0, %s62
      %s64 = scalar_lea.vmem [#allocation2], %s63
      %v65 = vld [vmem:[%s64] sm:$0x3]
      %s66 = sld [smem:[#allocation7]]
      %v67 = vstv %s66
      %v68 = vmul.f32 %v65, %v67
      %s69 = sld [smem:[#allocation7 + $0x4]]
      %v70 = vstv %s69
      %v71 = vmul.f32 %v65, %v70
      %s72 = sld [smem:[#allocation7 + $0x8]]
      %v73 = vstv %s72
      %v74 = vmul.f32 %v65, %v73
      %s75 = sadd.s32 0, 2
      %s76 = sadd.s32 %s75, %s62
      %s77 = scalar_lea.vmem [#allocation2], %s76
      %v78 = vld [vmem:[%s77] sm:$0x3]
      %s79 = sld [smem:[#allocation7 + $0x1]]
      %v80 = vstv %s79
      %v81 = vmul.f32 %v78, %v80
      %v82 = vadd.f32 %v68, %v81
      %s83 = sld [smem:[#allocation7 + $0x5]]
      %v84 = vstv %s83
      %v85 = vmul.f32 %v78, %v84
      %v86 = vadd.f32 %v71, %v85
      %s87 = sld [smem:[#allocation7 + $0x9]]
      %v88 = vstv %s87
      %v89 = vmul.f32 %v78, %v88
      %v90 = vadd.f32 %v74, %v89
      %s91 = sadd.s32 0, 4
      %s92 = sadd.s32 %s91, %s62
      %s93 = scalar_lea.vmem [#allocation2], %s92
      %v94 = vld [vmem:[%s93] sm:$0x3]
      %s95 = sld [smem:[#allocation7 + $0x2]]
      %v96 = vstv %s95
      %v97 = vmul.f32 %v94, %v96
      %v98 = vadd.f32 %v82, %v97
      %s99 = sld [smem:[#allocation7 + $0x6]]
      %v100 = vstv %s99
      %v101 = vmul.f32 %v94, %v100
      %v102 = vadd.f32 %v86, %v101
      %s103 = sld [smem:[#allocation7 + $0xa]]
      %v104 = vstv %s103
      %v105 = vmul.f32 %v94, %v104
      %v106 = vadd.f32 %v90, %v105
      %s107 = sadd.s32 0, 6
      %s108 = sadd.s32 %s107, %s62
      %s109 = scalar_lea.vmem [#allocation2], %s108
      %v110 = vld [vmem:[%s109] sm:$0x3]
      %s111 = sld [smem:[#allocation7 + $0x3]]
      %v112 = vstv %s111
      %v113 = vmul.f32 %v110, %v112
      %v114 = vadd.f32 %v98, %v113
      %s115 = sld [smem:[#allocation7 + $0x7]]
      %v116 = vstv %s115
      %v117 = vmul.f32 %v110, %v116
      %v118 = vadd.f32 %v102, %v117
      %s119 = sld [smem:[#allocation7 + $0xb]]
      %v120 = vstv %s119
      %v121 = vmul.f32 %v110, %v120
      %v122 = vadd.f32 %v106, %v121
      %s123 = sld [smem:[#allocation8]]
      %v124 = vstv %s123
      %v125 = vadd.f32 %v114, %v124
      %s126 = smul.u32 %s57, 6
      %s127 = sadd.s32 0, %s126
      %s128 = scalar_lea.vmem [#allocation9], %s127
      %129 = vst [vmem:[%s128] sm:$0x3] %v125
      %s130 = sld [smem:[#allocation8 + $0x1]]
      %v131 = vstv %s130
      %v132 = vadd.f32 %v118, %v131
      %s133 = sadd.s32 %s75, %s126
      %s134 = scalar_lea.vmem [#allocation9], %s133
      %135 = vst [vmem:[%s134] sm:$0x3] %v132
      %s136 = sld [smem:[#allocation8 + $0x2]]
      %v137 = vstv %s136
      %v138 = vadd.f32 %v122, %v137
      %s139 = sadd.s32 %s91, %s126
      %s140 = scalar_lea.vmem [#allocation9], %s139
      %141 = vst [vmem:[%s140] sm:$0x3] %v138
    $region30: #{tpu_custom_call.1} parent=1 // loop_footer
      %s61 = sadd.s32 1, %s57
    $region31: #{tpu_custom_call.1} parent=1 // loop_footer_branch
      %56 = sbr.rel target = $region27
    $region32: #{tpu_custom_call.1} parent=1 // loop_exit
      _
    // Predicated region
    $region33: #{tpu_custom_call.1} parent=1 // pred_check
      _
    $region34: #{tpu_custom_call.1} parent=1 // pred_check_branch
      %143 = sbr.rel (0) target = $region36
    $region35: #{tpu_custom_call.1} parent=1 // pred_region
      %145 = vsyncadd [#allocation4], 0
      %s146 = sshll.u32 [#allocation9], 4
      %s147 = int_to_ptr.vmem [resolvable:$true] %s146
      %s148 = sshll.u32 %s3, 4
      %s149 = int_to_ptr.hbm [resolvable:$true] %s148
      %154 = dma.vmem_to_hbm [thread:$0]  %s147, 192, %s149, [#allocation4], 32, 32, 2
    $region36: #{tpu_custom_call.1} parent=1 // pred_fallthru
      _
    // Predicated region
    $region37: #{tpu_custom_call.1} parent=1 // pred_check
      _
    $region38: #{tpu_custom_call.1} parent=1 // pred_check_branch
      %156 = sbr.rel (0) target = $region40
    $region39: #{tpu_custom_call.1} parent=1 // pred_region
      %158 = dma.done [#allocation4], 192
    $region40: #{tpu_custom_call.1} parent=1 // pred_fallthru
      _
    %159 = vsyncpa [#allocation3], 1
    %160 = vsyncpa [#allocation4], 1
    %161 = vsyncpa [#allocation5], 1
    %162 = vsyncpa [#allocation6], 1

</llo_original>
